<compile_context>
chip_gen: v6e
topology: v6e:2x2x1
jax: 0.10.0
libtpu: 0.0.40
codegen_flags: <defaults>
</compile_context>

<pallas_src>
import functools
from types import SimpleNamespace

import jax
import jax.numpy as jnp
from jax import lax
from jax.experimental import pallas as pl
from jax.experimental.pallas import tpu as pltpu


def _round_up(x, m):
    return ((x + m - 1) // m) * m


# ----------------------------------------------------------------------------
# Elementwise losses: L1 / MSE / SmoothL1 (beta = 1.0), mean reduction.
# ----------------------------------------------------------------------------
_BLOCK_BYTES = 1 << 20  # ~1 MiB per input block (per buffer).


def _elementwise_loss_kernel(pred_ref, tgt_ref, out_ref, acc_ref, *, kind,
                             inv_n_total):
    step = pl.program_id(1)

    @pl.when(step == 0)
    def _():
        acc_ref[...] = jnp.zeros_like(acc_ref)

    d = pred_ref[...].astype(jnp.float32) - tgt_ref[...].astype(jnp.float32)
    if kind == "l1":
        v = jnp.abs(d)
    elif kind == "mse":
        v = d * d
    elif kind == "smoothl1":
        ad = jnp.abs(d)
        v = jnp.where(ad < 1.0, 0.5 * d * d, ad - 0.5)
    else:
        raise ValueError(kind)

    # Per-lane partial sums: VPU adds only; no per-step cross-lane reduce.
    tr = v.shape[0]
    acc_ref[...] += jnp.sum(v.reshape(tr // 8, 8, 128), axis=0)

    @pl.when(step == pl.num_programs(1) - 1)
    def _():
        out_ref[...] = (acc_ref[...] * inv_n_total).reshape(1, 8, 128)


def _elementwise_loss(pred, target, *, kind):
    assert pred.shape == target.shape, (pred.shape, target.shape)
    total = pred.size
    cols = 128
    rows = -(-total // cols)

    # Dtype-aware tile cap: ~1 MiB per input block in the input's dtype.
    itemsize = jnp.dtype(pred.dtype).itemsize
    cap_rows = max(8, min(8192, (_BLOCK_BYTES // (cols * itemsize)) // 8 * 8))

    # Pick the step count first, then the smallest tile that covers it, so the
    # zero-padding added by the wrapper is at most a handful of rows.
    min_steps = -(-rows // cap_rows)
    if min_steps <= 1:
        n_split = 1
        steps_total = 1
    else:
        # Split the reduction across the 2 TensorCores on v7x (harmless on
        # v5e/v6e where the parallel axis just runs sequentially).
        n_split = 2
        steps_total = _round_up(min_steps, n_split)
    tile_rows = max(8, _round_up(-(-rows // steps_total), 8))
    steps_per_core = steps_total // n_split
    padded_rows = steps_total * tile_rows
    padded_total = padded_rows * cols

    def _prep(x):
        flat = x.reshape(-1)
        if padded_total != total:
            # Zero pad: both sides get the same pad -> diff is 0 -> loss 0.
            flat = jnp.pad(flat, (0, padded_total - total))
        return flat.reshape(padded_rows, cols)

    p2 = _prep(pred)
    t2 = _prep(target)

    kernel = functools.partial(
        _elementwise_loss_kernel, kind=kind, inv_n_total=1.0 / float(total)
    )
    out = pl.pallas_call(
        kernel,
        out_shape=jax.ShapeDtypeStruct((n_split, 8, 128), jnp.float32),
        grid=(n_split, steps_per_core),
        in_specs=[
            pl.BlockSpec((tile_rows, cols),
                         lambda c, i: (c * steps_per_core + i, 0)),
            pl.BlockSpec((tile_rows, cols),
                         lambda c, i: (c * steps_per_core + i, 0)),
        ],
        out_specs=pl.BlockSpec((1, 8, 128), lambda c, i: (c, 0, 0)),
        scratch_shapes=[pltpu.VMEM((8, 128), jnp.float32)],
        compiler_params=pltpu.CompilerParams(
            dimension_semantics=("parallel", "arbitrary")
        ),
    )(p2, t2)
    # Tiny final cross-lane/core reduce done once, in the wrapper.
    return jnp.sum(out)


# ----------------------------------------------------------------------------
# Cross-entropy with integer class targets, mean reduction.
# ----------------------------------------------------------------------------
def _cross_entropy_kernel(logits_ref, labels_ref, out_ref, acc_ref, *,
                          n_classes, inv_n_rows):
    @pl.when(pl.program_id(0) == 0)
    def _():
        acc_ref[...] = jnp.zeros_like(acc_ref)

    logits = logits_ref[...].astype(jnp.float32)          # (tile_n, c_pad)
    tn, cp = logits.shape
    col = lax.broadcasted_iota(jnp.int32, (tn, cp), 1)
    # Mask class-padding columns so they never affect the log-sum-exp.
    lm = jnp.where(col < n_classes, logits, jnp.float32(-1e30))
    m = jnp.max(lm, axis=-1, keepdims=True)                # (tile_n, 1)
    lse = jnp.log(jnp.sum(jnp.exp(lm - m), axis=-1, keepdims=True)) + m

    labels = labels_ref[...]                               # (tile_n, 1) int32
    picked = jnp.sum(jnp.where(col == labels, logits, 0.0),
                     axis=-1, keepdims=True)
    # Padded batch rows carry label -1 and contribute 0.
    row_loss = jnp.where(labels >= 0, lse - picked, 0.0)

    acc_ref[...] += jnp.sum(row_loss, keepdims=True)

    @pl.when(pl.program_id(0) == pl.num_programs(0) - 1)
    def _():
        out_ref[...] = acc_ref[...] * inv_n_rows


def _cross_entropy_loss(logits, labels):
    # TODO(synk): only PyTorch defaults (no class weights / ignore_index).
    n, c = logits.shape
    c_pad = _round_up(c, 128)

    # Cap each logits block at ~1 MiB in the input dtype, multiple of 8 rows.
    bytes_per_row = c_pad * jnp.dtype(logits.dtype).itemsize
    cap = max(8, min(1024, ((1 << 20) // bytes_per_row) // 8 * 8))
    # Choose the number of steps first so batch padding is minimal.
    n_steps = max(1, -(-n // cap))
    tile_n = max(8, _round_up(-(-n // n_steps), 8))
    n_pad = n_steps * tile_n

    lg = logits
    if c_pad != c or n_pad != n:
        lg = jnp.pad(lg, ((0, n_pad - n), (0, c_pad - c)))
    lab = labels.astype(jnp.int32).reshape(n, 1)
    if n_pad != n:
        lab = jnp.pad(lab, ((0, n_pad - n), (0, 0)), constant_values=-1)

    kernel = functools.partial(
        _cross_entropy_kernel, n_classes=c, inv_n_rows=1.0 / float(n)
    )
    out = pl.pallas_call(
        kernel,
        out_shape=jax.ShapeDtypeStruct((1, 1), jnp.float32),
        grid=(n_steps,),
        in_specs=[
            pl.BlockSpec((tile_n, c_pad), lambda i: (i, 0)),
            pl.BlockSpec((tile_n, 1), lambda i: (i, 0)),
        ],
        out_specs=pl.BlockSpec((1, 1), lambda i: (0, 0)),
        scratch_shapes=[pltpu.VMEM((1, 1), jnp.float32)],
        compiler_params=pltpu.CompilerParams(
            dimension_semantics=("arbitrary",)
        ),
    )(lg, lab)
    return out[0, 0]


# ----------------------------------------------------------------------------
# Criteria module equivalent.
# ----------------------------------------------------------------------------
class Criteria:
    def __init__(self, criteria_config):
        name = criteria_config.name
        if name in ("mae", "l1"):
            self._fn = functools.partial(_elementwise_loss, kind="l1")
        elif name in ("mse", "l2"):
            self._fn = functools.partial(_elementwise_loss, kind="mse")
        elif name == "crossentropy":
            self._fn = _cross_entropy_loss
        elif name == "smoothl1":
            self._fn = functools.partial(_elementwise_loss, kind="smoothl1")
        else:
            raise ValueError(f"Wrong criteria name: {name}")

    def __call__(self, pred, target):
        return self._fn(pred, target)

    forward = __call__


# ----------------------------------------------------------------------------
# Reference implementations (plain JAX) for sanity checking.
# ----------------------------------------------------------------------------
def _ref_loss(name, pred, target):
    if name in ("mae", "l1"):
        return jnp.mean(jnp.abs(pred - target))
    if name in ("mse", "l2"):
        return jnp.mean((pred - target) ** 2)
    if name == "smoothl1":
        d = pred - target
        ad = jnp.abs(d)
        return jnp.mean(jnp.where(ad < 1.0, 0.5 * d * d, ad - 0.5))
    if name == "crossentropy":
        logp = jax.nn.log_softmax(pred, axis=-1)
        return -jnp.mean(jnp.take_along_axis(logp, target[:, None], axis=-1))
    raise ValueError(name)


if __name__ == "__main__":
    key = jax.random.PRNGKey(0)
    k1, k2, k3, k4 = jax.random.split(key, 4)

    # Regression-style predictions/targets (NCHW-like, small shapes).
    pred = jax.random.normal(k1, (2, 4, 16, 16), dtype=jnp.float32)
    target = jax.random.normal(k2, (2, 4, 16, 16), dtype=jnp.float32)

    # Classification: logits (N, C) and integer labels (N,).
    logits = jax.random.normal(k3, (8, 32), dtype=jnp.float32)
    labels = jax.random.randint(k4, (8,), 0, 32, dtype=jnp.int32)

    ok = True
    for name in ("l1", "mse", "smoothl1", "crossentropy"):
        crit = Criteria(SimpleNamespace(name=name))
        if name == "crossentropy":
            got = crit(logits, labels)
            want = _ref_loss(name, logits, labels)
        else:
            got = crit(pred, target)
            want = _ref_loss(name, pred, target)
        got = jax.block_until_ready(got)
        if not jnp.allclose(got, want, rtol=1e-5, atol=1e-5):
            ok = False
            print(f"MISMATCH {name}: got={got} want={want}")

    if ok:
        print("KERNEL_OK")
</pallas_src>

<mosaic_0001>
module attributes {stable_mosaic.version = 11 : i64} {
  func.func @_elementwise_loss_kernel(%arg0: i32, %arg1: i32, %arg2: memref<16x128xf32, #tpu.memory_space<vmem>>, %arg3: memref<16x128xf32, #tpu.memory_space<vmem>>, %arg4: memref<1x8x128xf32, #tpu.memory_space<vmem>>, %arg5: memref<8x128xf32, #tpu.memory_space<vmem>>) attributes {dimension_semantics = [#tpu.dimension_semantics<parallel>, #tpu.dimension_semantics<arbitrary>], iteration_bounds = array<i64: 1, 1>, scalar_prefetch = 0 : i64, scratch_operands = 1 : i64, tpu.core_type = #tpu.core_type<tc>, window_params = [{transform_indices = @transform_0, window_bounds = array<i64: 16, 128>}, {transform_indices = @transform_1, window_bounds = array<i64: 16, 128>}, {transform_indices = @transform_2, window_bounds = array<i64: 1, 8, 128>}]} {
    %c0_i32 = arith.constant 0 : i32
    %0 = arith.cmpi eq, %arg1, %c0_i32 : i32
    %1 = arith.extui %0 : i1 to i32
    %c0_i32_0 = arith.constant 0 : i32
    %2 = arith.cmpi ne, %1, %c0_i32_0 : i32
    scf.if %2 {
      %cst_10 = arith.constant 0.000000e+00 : f32
      %15 = vector.broadcast %cst_10 : f32 to vector<8x128xf32>
      %c0_11 = arith.constant 0 : index
      %c0_12 = arith.constant 0 : index
      %16 = vector.load %arg5[%c0_11, %c0_12] : memref<8x128xf32, #tpu.memory_space<vmem>>, vector<8x128xf32>
      tpu.vector_store %arg5[%c0_11, %c0_12], %15 {strides = array<i32>} : memref<8x128xf32, #tpu.memory_space<vmem>>, vector<8x128xf32>,
    } else {
    }
    %c0 = arith.constant 0 : index
    %c0_1 = arith.constant 0 : index
    %3 = vector.load %arg2[%c0, %c0_1] : memref<16x128xf32, #tpu.memory_space<vmem>>, vector<16x128xf32>
    %c0_2 = arith.constant 0 : index
    %c0_3 = arith.constant 0 : index
    %4 = vector.load %arg3[%c0_2, %c0_3] : memref<16x128xf32, #tpu.memory_space<vmem>>, vector<16x128xf32>
    %5 = arith.subf %3, %4 : vector<16x128xf32>
    %6 = math.absf %5 : vector<16x128xf32>
    %c0_4 = arith.constant 0 : index
    %c0_5 = arith.constant 0 : index
    %7 = vector.load %arg5[%c0_4, %c0_5] : memref<8x128xf32, #tpu.memory_space<vmem>>, vector<8x128xf32>
    %8 = vector.shape_cast %6 : vector<16x128xf32> to vector<2x8x128xf32>
    %cst = arith.constant dense<0.000000e+00> : vector<8x128xf32>
    %9 = vector.multi_reduction <add>, %8, %cst [0] : vector<2x8x128xf32> to vector<8x128xf32>
    %10 = arith.addf %7, %9 : vector<8x128xf32>
    %c0_6 = arith.constant 0 : index
    %c0_7 = arith.constant 0 : index
    %11 = vector.load %arg5[%c0_6, %c0_7] : memref<8x128xf32, #tpu.memory_space<vmem>>, vector<8x128xf32>
    tpu.vector_store %arg5[%c0_6, %c0_7], %10 {strides = array<i32>} : memref<8x128xf32, #tpu.memory_space<vmem>>, vector<8x128xf32>,
    %c0_i32_8 = arith.constant 0 : i32
    %12 = arith.cmpi eq, %arg1, %c0_i32_8 : i32
    %13 = arith.extui %12 : i1 to i32
    %c0_i32_9 = arith.constant 0 : i32
    %14 = arith.cmpi ne, %13, %c0_i32_9 : i32
    scf.if %14 {
      %c0_10 = arith.constant 0 : index
      %c0_11 = arith.constant 0 : index
      %15 = vector.load %arg5[%c0_10, %c0_11] : memref<8x128xf32, #tpu.memory_space<vmem>>, vector<8x128xf32>
      %cst_12 = arith.constant 4.8828125E-4 : f32
      %16 = vector.broadcast %cst_12 : f32 to vector<8x128xf32>
      %17 = arith.mulf %15, %16 : vector<8x128xf32>
      %18 = vector.shape_cast %17 : vector<8x128xf32> to vector<1x8x128xf32>
      %c0_13 = arith.constant 0 : index
      %c0_14 = arith.constant 0 : index
      %c0_15 = arith.constant 0 : index
      %19 = vector.load %arg4[%c0_13, %c0_14, %c0_15] : memref<1x8x128xf32, #tpu.memory_space<vmem>>, vector<1x8x128xf32>
      tpu.vector_store %arg4[%c0_13, %c0_14, %c0_15], %18 {strides = array<i32>} : memref<1x8x128xf32, #tpu.memory_space<vmem>>, vector<1x8x128xf32>,
    } else {
    }
    return
  }
  func.func @transform_0(%arg0: i32, %arg1: i32) -> (i32, i32) {
    %c1_i32 = arith.constant 1 : i32
    %0 = arith.muli %arg0, %c1_i32 : i32
    %1 = arith.addi %0, %arg1 : i32
    %c0_i32 = arith.constant 0 : i32
    %c0_i32_0 = arith.constant 0 : i32
    return %1, %c0_i32 : i32, i32
  }
  func.func @transform_1(%arg0: i32, %arg1: i32) -> (i32, i32) {
    %c1_i32 = arith.constant 1 : i32
    %0 = arith.muli %arg0, %c1_i32 : i32
    %1 = arith.addi %0, %arg1 : i32
    %c0_i32 = arith.constant 0 : i32
    %c0_i32_0 = arith.constant 0 : i32
    return %1, %c0_i32 : i32, i32
  }
  func.func @transform_2(%arg0: i32, %arg1: i32) -> (i32, i32, i32) {
    %c0_i32 = arith.constant 0 : i32
    %c0_i32_0 = arith.constant 0 : i32
    %c0_i32_1 = arith.constant 0 : i32
    return %arg0, %c0_i32, %c0_i32_0 : i32, i32, i32
  }
}

</mosaic_0001>

<llo_original>
// kernel: tpu_custom_call.1
$region0: #{tpu_custom_call.1}
  #allocation0 [shape = 'u32[]', space=smem, size = 0x4, offset = 0x4, fixed_abs, tag = 'smem constant byte address 0x4 - core index']
  #allocation1 [shape = 'u32[144,128]{1,0:T(1,128)}', space=vmem, size = 0x12000, scoped, tag = 'internal scratch']
  #allocation2 [shape = 'f32[8,128]{1,0:T(8,128)}', space=vmem, size = 0x1000, scoped, tag = 'scratch operand']
  %s0 = inlined_call_operand.hbm [shape: f32[16,128], index: 0, kind: input, shape index: {}]
  %s1 = inlined_call_operand.hbm [shape: f32[16,128], index: 1, kind: input, shape index: {}]
  %s2 = inlined_call_operand.hbm [shape: f32[1,8,128], index: 2, kind: output, shape index: {}]
  %s3 = sld [smem:[#allocation0]]
  $region34: #{tpu_custom_call.1} parent=0
    _
  %s5 = ssub.s32 1, %s3
  %s6 = scalar_select 0, %s5, %s3
  $region1: #{tpu_custom_call.1} parent=0
    #allocation3 [shape = 'u8[8192]{0}', space=vmem, size = 0x2000, scoped, tag = 'input window, operand 0, single buffered']
    #allocation4 [shape = 's32[1]{0}', space=sflag, size = 0x4, scoped, tag = 'scoped memory for tpu_custom_call.1']
    #allocation5 [shape = 's32[1]{0}', space=sflag, size = 0x4, scoped, tag = 'scoped memory for tpu_custom_call.1']
    #allocation6 [shape = 'u8[8192]{0}', space=vmem, size = 0x2000, scoped, tag = 'input window, operand 1, single buffered']
    #allocation7 [shape = 's32[1]{0}', space=sflag, size = 0x4, scoped, tag = 'scoped memory for tpu_custom_call.1']
    #allocation8 [shape = 'u8[4096]{0}', space=vmem, size = 0x1000, scoped, tag = 'output window, operand 0, single buffered']
    %7 = vsyncpa [#allocation4], 0
    %8 = vsyncpa [#allocation7], 0
    %9 = vsyncpa [#allocation5], 0
    // Predicated region
    $region2: #{tpu_custom_call.1} parent=1 // pred_check
      _
    $region3: #{tpu_custom_call.1} parent=1 // pred_check_branch
      %11 = sbr.rel (0) target = $region5
    $region4: #{tpu_custom_call.1} parent=1 // pred_region
      %s12 = sadd.s32 0, 0
      %s13 = smul.u32 2, %s12
      %s15 = ssub.s32 256, 256
      %16 = vsyncadd [#allocation4], %s15
      %s17 = smul.addr %s13, 128
      %s18 = scalar_lea.hbm %s0, %s17
      %s19 = sshll.u32 [#allocation3], 4
      %s20 = int_to_ptr.vmem [resolvable:$true] %s19
      %25 = dma.hbm_to_vmem [thread:$0]  %s18, 256, %s20, [#allocation4], 128, 128, 8
    $region5: #{tpu_custom_call.1} parent=1 // pred_fallthru
      _
    // Predicated region
    $region6: #{tpu_custom_call.1} parent=1 // pred_check
      _
    $region7: #{tpu_custom_call.1} parent=1 // pred_check_branch
      %27 = sbr.rel (0) target = $region9
    $region8: #{tpu_custom_call.1} parent=1 // pred_region
      %s28 = sadd.s32 0, 0
      %s29 = smul.u32 2, %s28
      %s31 = ssub.s32 256, 256
      %32 = vsyncadd [#allocation7], %s31
      %s33 = smul.addr %s29, 128
      %s34 = scalar_lea.hbm %s1, %s33
      %s35 = sshll.u32 [#allocation6], 4
      %s36 = int_to_ptr.vmem [resolvable:$true] %s35
      %41 = dma.hbm_to_vmem [thread:$0]  %s34, 256, %s36, [#allocation7], 128, 128, 8
    $region9: #{tpu_custom_call.1} parent=1 // pred_fallthru
      _
    // Predicated region
    $region10: #{tpu_custom_call.1} parent=1 // pred_check
      _
    $region11: #{tpu_custom_call.1} parent=1 // pred_check_branch
      %43 = sbr.rel (0) target = $region13
    $region12: #{tpu_custom_call.1} parent=1 // pred_region
      %44 = dma.done [#allocation4], 256
    $region13: #{tpu_custom_call.1} parent=1 // pred_fallthru
      _
    // Predicated region
    $region14: #{tpu_custom_call.1} parent=1 // pred_check
      _
    $region15: #{tpu_custom_call.1} parent=1 // pred_check_branch
      %46 = sbr.rel (0) target = $region17
    $region16: #{tpu_custom_call.1} parent=1 // pred_region
      %47 = dma.done [#allocation7], 256
    $region17: #{tpu_custom_call.1} parent=1 // pred_fallthru
      _
    %s48 = sadd.s32 0, 0
    %s49 = smul.u32 2, %s48
    %s50 = sadd.s32 0, 0
    %s51 = smul.u32 2, %s50
    %p52 = scmp.eq.s32.totalorder 0, 0
    // Predicated region
    $region18: #{tpu_custom_call.1} parent=1 // pred_check
      %p53 = pneg %p52
    $region19: #{tpu_custom_call.1} parent=1 // pred_check_branch
      %55 = sbr.rel (%p53) target = $region21
    $region20: #{tpu_custom_call.1} parent=1 // pred_region
      %56 = vst [vmem:[#allocation2] sm:$0xff] 0.0
    $region21: #{tpu_custom_call.1} parent=1 // pred_fallthru
      _
    %v57 = vld [vmem:[#allocation3] sm:$0xff]
    %v58 = vld [vmem:[#allocation3 + $0x8] sm:$0xff]
    %v59 = vld [vmem:[#allocation6] sm:$0xff]
    %v60 = vld [vmem:[#allocation6 + $0x8] sm:$0xff]
    %v61 = vsub.f32 %v57, %v59
    %v62 = vsub.f32 %v58, %v60
    %v63 = vand.u32 2147483647, %v61
    %v64 = vand.u32 2147483647, %v62
    %v65 = vld [vmem:[#allocation2] sm:$0xff]
    %v66 = vadd.f32 %v63, %v64
    %v67 = vadd.f32 %v65, %v66
    %68 = vst [vmem:[#allocation2] sm:$0xff] %v67
    // Predicated region
    $region22: #{tpu_custom_call.1} parent=1 // pred_check
      %p69 = pneg %p52
    $region23: #{tpu_custom_call.1} parent=1 // pred_check_branch
      %71 = sbr.rel (%p69) target = $region25
    $region24: #{tpu_custom_call.1} parent=1 // pred_region
      %v72 = vld [vmem:[#allocation2] sm:$0xff]
      %v73 = vmul.f32 %v72, 0.00048828125
      %74 = vst [vmem:[#allocation8] sm:$0xff] %v73
    $region25: #{tpu_custom_call.1} parent=1 // pred_fallthru
      _
    // Predicated region
    $region26: #{tpu_custom_call.1} parent=1 // pred_check
      _
    $region27: #{tpu_custom_call.1} parent=1 // pred_check_branch
      %76 = sbr.rel (0) target = $region29
    $region28: #{tpu_custom_call.1} parent=1 // pred_region
      %s78 = ssub.s32 128, 128
      %79 = vsyncadd [#allocation5], %s78
      %s81 = sshll.u32 [#allocation8], 4
      %s82 = int_to_ptr.vmem [resolvable:$true] %s81
      %84 = dma.vmem_to_hbm [thread:$0]  %s82, 128, %s2, [#allocation5]
    $region29: #{tpu_custom_call.1} parent=1 // pred_fallthru
      _
    // Predicated region
    $region30: #{tpu_custom_call.1} parent=1 // pred_check
      _
    $region31: #{tpu_custom_call.1} parent=1 // pred_check_branch
      %86 = sbr.rel (0) target = $region33
    $region32: #{tpu_custom_call.1} parent=1 // pred_region
      %87 = dma.done [#allocation5], 128
    $region33: #{tpu_custom_call.1} parent=1 // pred_fallthru
      _
    %88 = vsyncpa [#allocation4], 1
    %89 = vsyncpa [#allocation7], 1
    %90 = vsyncpa [#allocation5], 1

</llo_original>
